<compile_context>
chip_gen: v7x
topology: tpu7x:2x2x1
jax: 0.10.0
libtpu: 0.0.40
codegen_flags: <defaults>
</compile_context>

<pallas_src>
import jax
import jax.numpy as jnp
from jax.experimental import pallas as pl
from jax.experimental.pallas import tpu as pltpu


def _round_up(x: int, m: int) -> int:
    return (x + m - 1) // m * m


def dqn_mlp_kernel(x_ref, w1_ref, b1_ref, w2_ref, b2_ref, out_ref):
    # hidden = relu(x @ W1 + b1): f32 MXU operands, f32 accumulation.
    h = jnp.dot(x_ref[...], w1_ref[...], preferred_element_type=jnp.float32)
    h = jnp.maximum(h + b1_ref[...], 0.0)            # f32 epilogue on the VPU
    # out = hidden @ W2 + b2
    o = jnp.dot(h, w2_ref[...], preferred_element_type=jnp.float32)
    out_ref[...] = (o + b2_ref[...]).astype(out_ref.dtype)


def prepare_params(w1, b1, w2, b2):
    """One-time parameter prep (do NOT call per forward).

    Pads the output dimension of W2/b2 to a lane-dense multiple of 128 and
    ensures f32 dtypes. Keeps the unpadded tensors around for the small-batch
    XLA fallback path.
    """
    num_inputs, hidden = w1.shape
    num_outputs = w2.shape[1]
    n_pad = _round_up(num_outputs, 128)

    w1 = w1.astype(jnp.float32)
    b1 = b1.astype(jnp.float32)
    w2 = w2.astype(jnp.float32)
    b2 = b2.astype(jnp.float32)
    if n_pad != num_outputs:
        w2_pad = jnp.pad(w2, ((0, 0), (0, n_pad - num_outputs)))
        b2_pad = jnp.pad(b2, ((0, 0), (0, n_pad - num_outputs)))
    else:
        w2_pad, b2_pad = w2, b2

    return {
        "w1": w1, "b1": b1, "w2": w2, "b2": b2,
        "w2_pad": w2_pad, "b2_pad": b2_pad,
        "num_inputs": num_inputs, "hidden": hidden,
        "num_outputs": num_outputs, "n_pad": n_pad,
    }


def dqn_forward(state, params, *, block_b: int = 2048, min_pallas_batch: int = 65):
    """DQN forward pass: relu(state @ W1 + b1) @ W2 + b2.

    state: (B, num_inputs) f32
    params: dict from prepare_params()
    returns (B, num_outputs) f32
    """
    B, num_inputs = state.shape
    hidden = params["hidden"]
    num_outputs = params["num_outputs"]
    n_pad = params["n_pad"]
    state = state.astype(jnp.float32)

    if B < min_pallas_batch:
        # Tiny batches (e.g. a single env step): pallas_call launch + one grid
        # step exceeds the whole MLP's FLOP/DMA time; let XLA fuse the GEMMs.
        h = jnp.maximum(state @ params["w1"] + params["b1"], 0.0)
        return h @ params["w2"] + params["b2"]

    w2_pad, b2_pad = params["w2_pad"], params["b2_pad"]

    # Batch tiling: fewest tiles of size <= block_b, each a multiple of 8
    # sublanes, minimizing padded rows (B=300 -> tb=304, grid=1).
    n_tiles = pl.cdiv(B, block_b)
    tb = _round_up(pl.cdiv(B, n_tiles), 8)
    grid_b = pl.cdiv(B, tb)
    b_pad = grid_b * tb
    if b_pad != B:
        state = jnp.pad(state, ((0, b_pad - B), (0, 0)))

    # Advisory cost model for XLA's scheduler around the custom call.
    flops = 2 * b_pad * (num_inputs * hidden + hidden * n_pad)
    bytes_accessed = 4 * (b_pad * num_inputs + b_pad * n_pad
                          + num_inputs * hidden + hidden
                          + hidden * n_pad + n_pad)
    cost = pl.CostEstimate(flops=flops, transcendentals=0,
                           bytes_accessed=bytes_accessed)

    # VMEM footprint: double-buffered activation/output tiles + resident
    # weights (x2 buffers). Only set an explicit limit if we might exceed
    # v5e's 16 MiB scoped default (large block_b).
    vmem_bytes = 4 * (2 * tb * (num_inputs + n_pad)
                      + 2 * (num_inputs * hidden + hidden + hidden * n_pad + n_pad))
    vmem_limit = int(1.5 * vmem_bytes) if vmem_bytes > 12 * 1024 * 1024 else None

    out = pl.pallas_call(
        dqn_mlp_kernel,
        out_shape=jax.ShapeDtypeStruct((b_pad, n_pad), jnp.float32),
        grid_spec=pltpu.PrefetchScalarGridSpec(
            num_scalar_prefetch=0,
            grid=(grid_b,),
            in_specs=[
                # Activations stream per batch tile.
                pl.BlockSpec((tb, num_inputs), lambda i: (i, 0)),
                # Weights/biases: constant block index -> fetched once, resident.
                pl.BlockSpec((num_inputs, hidden), lambda i: (0, 0)),
                pl.BlockSpec((1, hidden), lambda i: (0, 0)),
                pl.BlockSpec((hidden, n_pad), lambda i: (0, 0)),
                pl.BlockSpec((1, n_pad), lambda i: (0, 0)),
            ],
            out_specs=pl.BlockSpec((tb, n_pad), lambda i: (i, 0)),
        ),
        compiler_params=pltpu.CompilerParams(
            dimension_semantics=("parallel",),  # v7x: shard batch tiles over 2 TCs
            vmem_limit_bytes=vmem_limit,
        ),
        cost_estimate=cost,
    )(state, params["w1"], params["b1"], w2_pad, b2_pad)

    return out[:B, :num_outputs]


def init_params(key, num_inputs, num_outputs, hidden_size=256):
    """Deterministic init mirroring nn.Linear's U(-1/sqrt(fan_in), 1/sqrt(fan_in))."""
    k1, k2, k3, k4 = jax.random.split(key, 4)
    bound1 = 1.0 / jnp.sqrt(num_inputs)
    bound2 = 1.0 / jnp.sqrt(hidden_size)
    # Stored transposed relative to PyTorch: (in_features, out_features).
    w1 = jax.random.uniform(k1, (num_inputs, hidden_size), jnp.float32, -bound1, bound1)
    b1 = jax.random.uniform(k2, (1, hidden_size), jnp.float32, -bound1, bound1)
    w2 = jax.random.uniform(k3, (hidden_size, num_outputs), jnp.float32, -bound2, bound2)
    b2 = jax.random.uniform(k4, (1, num_outputs), jnp.float32, -bound2, bound2)
    return w1, b1, w2, b2


if __name__ == "__main__":
    num_inputs = 32
    num_outputs = 16
    hidden_size = 256

    key = jax.random.PRNGKey(0)
    k_x1, k_x2, k_p = jax.random.split(key, 3)
    w1, b1, w2, b2 = init_params(k_p, num_inputs, num_outputs, hidden_size)
    params = prepare_params(w1, b1, w2, b2)   # one-time weight prep

    def reference(s):
        h = jnp.maximum(
            jnp.dot(s, w1, precision=jax.lax.Precision.HIGHEST) + b1, 0.0)
        return jnp.dot(h, w2, precision=jax.lax.Precision.HIGHEST) + b2

    # --- Test 1: Pallas path, single minimally-padded tile (300 -> tb=304, grid=(1,)) ---
    batch1 = 300
    s1 = jax.random.normal(k_x1, (batch1, num_inputs), dtype=jnp.float32)
    o1 = jax.block_until_ready(dqn_forward(s1, params))
    assert o1.shape == (batch1, num_outputs)
    assert jnp.allclose(o1, reference(s1), atol=2e-2, rtol=2e-2)

    # --- Test 2: Pallas path with a multi-tile grid (block_b=128 -> tb=104, grid=(3,)) ---
    o1b = jax.block_until_ready(dqn_forward(s1, params, block_b=128))
    assert o1b.shape == (batch1, num_outputs)
    assert jnp.allclose(o1b, reference(s1), atol=2e-2, rtol=2e-2)

    # --- Test 3: tiny batch -> XLA-fused bypass path (Pallas overhead not worth it) ---
    batch2 = 8
    s2 = jax.random.normal(k_x2, (batch2, num_inputs), dtype=jnp.float32)
    o2 = jax.block_until_ready(dqn_forward(s2, params))
    assert o2.shape == (batch2, num_outputs)
    assert jnp.allclose(o2, reference(s2), atol=2e-2, rtol=2e-2)

    print("KERNEL_OK")
</pallas_src>

<mosaic_0001>
module attributes {stable_mosaic.version = 11 : i64} {
  func.func @dqn_mlp_kernel(%arg0: i32, %arg1: memref<304x32xf32, #tpu.memory_space<vmem>>, %arg2: memref<32x256xf32, #tpu.memory_space<vmem>>, %arg3: memref<1x256xf32, #tpu.memory_space<vmem>>, %arg4: memref<256x128xf32, #tpu.memory_space<vmem>>, %arg5: memref<1x128xf32, #tpu.memory_space<vmem>>, %arg6: memref<304x128xf32, #tpu.memory_space<vmem>>) attributes {dimension_semantics = [#tpu.dimension_semantics<parallel>], iteration_bounds = array<i64: 1>, scalar_prefetch = 0 : i64, scratch_operands = 0 : i64, tpu.core_type = #tpu.core_type<tc>, window_params = [{transform_indices = @transform_0, window_bounds = array<i64: 304, 32>}, {pipeline_mode = #tpu.pipeline_mode<synchronous>, transform_indices = @transform_1, window_bounds = array<i64: 32, 256>}, {pipeline_mode = #tpu.pipeline_mode<synchronous>, transform_indices = @transform_2, window_bounds = array<i64: 1, 256>}, {pipeline_mode = #tpu.pipeline_mode<synchronous>, transform_indices = @transform_3, window_bounds = array<i64: 256, 128>}, {pipeline_mode = #tpu.pipeline_mode<synchronous>, transform_indices = @transform_4, window_bounds = array<i64: 1, 128>}, {transform_indices = @transform_5, window_bounds = array<i64: 304, 128>}]} {
    %c0 = arith.constant 0 : index
    %c0_0 = arith.constant 0 : index
    %0 = vector.load %arg1[%c0, %c0_0] : memref<304x32xf32, #tpu.memory_space<vmem>>, vector<304x32xf32>
    %c0_1 = arith.constant 0 : index
    %c0_2 = arith.constant 0 : index
    %1 = vector.load %arg2[%c0_1, %c0_2] : memref<32x256xf32, #tpu.memory_space<vmem>>, vector<32x256xf32>
    %cst = arith.constant dense<0.000000e+00> : vector<304x256xf32>
    %2 = tpu.matmul %0, %1, %cst {dimension_numbers = #tpu.dot_dimension_numbers<[1], [0], [0], [1], [0, 0, 1, 1], [], []>} : vector<304x32xf32>, vector<32x256xf32>, vector<304x256xf32> -> vector<304x256xf32>
    %c0_3 = arith.constant 0 : index
    %c0_4 = arith.constant 0 : index
    %3 = vector.load %arg3[%c0_3, %c0_4] : memref<1x256xf32, #tpu.memory_space<vmem>>, vector<1x256xf32>
    %4 = vector.broadcast %3 : vector<1x256xf32> to vector<304x256xf32>
    %5 = arith.addf %2, %4 : vector<304x256xf32>
    %cst_5 = arith.constant 0.000000e+00 : f32
    %6 = vector.broadcast %cst_5 : f32 to vector<304x256xf32>
    %7 = arith.maximumf %5, %6 : vector<304x256xf32>
    %c0_6 = arith.constant 0 : index
    %c0_7 = arith.constant 0 : index
    %8 = vector.load %arg4[%c0_6, %c0_7] : memref<256x128xf32, #tpu.memory_space<vmem>>, vector<256x128xf32>
    %cst_8 = arith.constant dense<0.000000e+00> : vector<304x128xf32>
    %9 = tpu.matmul %7, %8, %cst_8 {dimension_numbers = #tpu.dot_dimension_numbers<[1], [0], [0], [1], [0, 0, 1, 1], [], []>} : vector<304x256xf32>, vector<256x128xf32>, vector<304x128xf32> -> vector<304x128xf32>
    %c0_9 = arith.constant 0 : index
    %c0_10 = arith.constant 0 : index
    %10 = vector.load %arg5[%c0_9, %c0_10] : memref<1x128xf32, #tpu.memory_space<vmem>>, vector<1x128xf32>
    %11 = vector.broadcast %10 : vector<1x128xf32> to vector<304x128xf32>
    %12 = arith.addf %9, %11 : vector<304x128xf32>
    %c0_11 = arith.constant 0 : index
    %c0_12 = arith.constant 0 : index
    %13 = vector.load %arg6[%c0_11, %c0_12] : memref<304x128xf32, #tpu.memory_space<vmem>>, vector<304x128xf32>
    tpu.vector_store %arg6[%c0_11, %c0_12], %12 {strides = array<i32>} : memref<304x128xf32, #tpu.memory_space<vmem>>, vector<304x128xf32>,
    return
  }
  func.func @transform_0(%arg0: i32) -> (i32, i32) {
    %c0_i32 = arith.constant 0 : i32
    %c0_i32_0 = arith.constant 0 : i32
    return %arg0, %c0_i32 : i32, i32
  }
  func.func @transform_1(%arg0: i32) -> (i32, i32) {
    %c0_i32 = arith.constant 0 : i32
    %c0_i32_0 = arith.constant 0 : i32
    %c0_i32_1 = arith.constant 0 : i32
    return %c0_i32, %c0_i32_0 : i32, i32
  }
  func.func @transform_2(%arg0: i32) -> (i32, i32) {
    %c0_i32 = arith.constant 0 : i32
    %c0_i32_0 = arith.constant 0 : i32
    %c0_i32_1 = arith.constant 0 : i32
    return %c0_i32, %c0_i32_0 : i32, i32
  }
  func.func @transform_3(%arg0: i32) -> (i32, i32) {
    %c0_i32 = arith.constant 0 : i32
    %c0_i32_0 = arith.constant 0 : i32
    %c0_i32_1 = arith.constant 0 : i32
    return %c0_i32, %c0_i32_0 : i32, i32
  }
  func.func @transform_4(%arg0: i32) -> (i32, i32) {
    %c0_i32 = arith.constant 0 : i32
    %c0_i32_0 = arith.constant 0 : i32
    %c0_i32_1 = arith.constant 0 : i32
    return %c0_i32, %c0_i32_0 : i32, i32
  }
  func.func @transform_5(%arg0: i32) -> (i32, i32) {
    %c0_i32 = arith.constant 0 : i32
    %c0_i32_0 = arith.constant 0 : i32
    return %arg0, %c0_i32 : i32, i32
  }
}

</mosaic_0001>

<llo_original>
// kernel: tpu_custom_call.1
$region0: #{tpu_custom_call.1}
  #allocation0 [shape = 'u32[]', space=smem, size = 0x4, offset = 0x4, fixed_abs, tag = 'smem constant byte address 0x4 - core index']
  #allocation1 [shape = 'u32[144,128]{1,0:T(1,128)}', space=vmem, size = 0x12000, scoped, tag = 'internal scratch']
  %s0 = inlined_call_operand.vmem [shape: f32[304,32], index: 0, kind: input, shape index: {}]
  %s1 = inlined_call_operand.vmem [shape: f32[32,256], index: 1, kind: input, shape index: {}]
  %s2 = inlined_call_operand.vmem [shape: f32[1,256], index: 2, kind: input, shape index: {}]
  %s3 = inlined_call_operand.vmem [shape: f32[256,128], index: 3, kind: input, shape index: {}]
  %s4 = inlined_call_operand.vmem [shape: f32[1,128], index: 4, kind: input, shape index: {}]
  %s5 = inlined_call_operand.hbm [shape: f32[304,128], index: 5, kind: output, shape index: {}]
  %s6 = sld [smem:[#allocation0]]
  $region30: #{tpu_custom_call.1} parent=0
    _
  %s8 = ssub.s32 1, %s6
  %s9 = scalar_select 0, %s8, %s6
  $region1: #{tpu_custom_call.1} parent=0
    #allocation2 [shape = 'u8[155648]{0}', space=vmem, size = 0x26000, scoped, tag = 'output window, operand 0, single buffered']
    #allocation3 [shape = 's32[1]{0}', space=sflag, size = 0x4, scoped, tag = 'scoped memory for tpu_custom_call.1']
    %10 = vsyncpa [#allocation3], 0
    // Predicated region
    $region2: #{tpu_custom_call.1} parent=1 // pred_check
      _
    $region3: #{tpu_custom_call.1} parent=1 // pred_check_branch
      %12 = sbr.rel (0) target = $region5
    $region4: #{tpu_custom_call.1} parent=1 // pred_region
      _
    $region5: #{tpu_custom_call.1} parent=1 // pred_fallthru
      _
    // Predicated region
    $region6: #{tpu_custom_call.1} parent=1 // pred_check
      _
    $region7: #{tpu_custom_call.1} parent=1 // pred_check_branch
      %14 = sbr.rel (0) target = $region9
    $region8: #{tpu_custom_call.1} parent=1 // pred_region
      _
    $region9: #{tpu_custom_call.1} parent=1 // pred_fallthru
      _
    // Predicated region
    $region10: #{tpu_custom_call.1} parent=1 // pred_check
      _
    $region11: #{tpu_custom_call.1} parent=1 // pred_check_branch
      %16 = sbr.rel (0) target = $region13
    $region12: #{tpu_custom_call.1} parent=1 // pred_region
      _
    $region13: #{tpu_custom_call.1} parent=1 // pred_fallthru
      _
    // Predicated region
    $region14: #{tpu_custom_call.1} parent=1 // pred_check
      _
    $region15: #{tpu_custom_call.1} parent=1 // pred_check_branch
      %18 = sbr.rel (0) target = $region17
    $region16: #{tpu_custom_call.1} parent=1 // pred_region
      _
    $region17: #{tpu_custom_call.1} parent=1 // pred_fallthru
      _
    // Predicated region
    $region18: #{tpu_custom_call.1} parent=1 // pred_check
      _
    $region19: #{tpu_custom_call.1} parent=1 // pred_check_branch
      %20 = sbr.rel (0) target = $region21
    $region20: #{tpu_custom_call.1} parent=1 // pred_region
      _
    $region21: #{tpu_custom_call.1} parent=1 // pred_fallthru
      _
    %v21 = vld [vmem:[%s0] sm:$0xff]
    %v22 = vld [vmem:[%s0 + $0x8] sm:$0xff]
    %v23 = vld [vmem:[%s0 + $0x10] sm:$0xff]
    %v24 = vld [vmem:[%s0 + $0x18] sm:$0xff]
    %v25 = vld [vmem:[%s0 + $0x20] sm:$0xff]
    %v26 = vld [vmem:[%s0 + $0x28] sm:$0xff]
    %v27 = vld [vmem:[%s0 + $0x30] sm:$0xff]
    %v28 = vld [vmem:[%s0 + $0x38] sm:$0xff]
    %v29 = vld [vmem:[%s0 + $0x40] sm:$0xff]
    %v30 = vld [vmem:[%s0 + $0x48] sm:$0xff]
    %v31 = vld [vmem:[%s0 + $0x50] sm:$0xff]
    %v32 = vld [vmem:[%s0 + $0x58] sm:$0xff]
    %v33 = vld [vmem:[%s0 + $0x60] sm:$0xff]
    %v34 = vld [vmem:[%s0 + $0x68] sm:$0xff]
    %v35 = vld [vmem:[%s0 + $0x70] sm:$0xff]
    %v36 = vld [vmem:[%s0 + $0x78] sm:$0xff]
    %v37 = vld [vmem:[%s0 + $0x80] sm:$0xff]
    %v38 = vld [vmem:[%s0 + $0x88] sm:$0xff]
    %v39 = vld [vmem:[%s0 + $0x90] sm:$0xff]
    %v40 = vld [vmem:[%s0 + $0x98] sm:$0xff]
    %v41 = vld [vmem:[%s0 + $0xa0] sm:$0xff]
    %v42 = vld [vmem:[%s0 + $0xa8] sm:$0xff]
    %v43 = vld [vmem:[%s0 + $0xb0] sm:$0xff]
    %v44 = vld [vmem:[%s0 + $0xb8] sm:$0xff]
    %v45 = vld [vmem:[%s0 + $0xc0] sm:$0xff]
    %v46 = vld [vmem:[%s0 + $0xc8] sm:$0xff]
    %v47 = vld [vmem:[%s0 + $0xd0] sm:$0xff]
    %v48 = vld [vmem:[%s0 + $0xd8] sm:$0xff]
    %v49 = vld [vmem:[%s0 + $0xe0] sm:$0xff]
    %v50 = vld [vmem:[%s0 + $0xe8] sm:$0xff]
    %v51 = vld [vmem:[%s0 + $0xf0] sm:$0xff]
    %v52 = vld [vmem:[%s0 + $0xf8] sm:$0xff]
    %v53 = vld [vmem:[%s0 + $0x100] sm:$0xff]
    %v54 = vld [vmem:[%s0 + $0x108] sm:$0xff]
    %v55 = vld [vmem:[%s0 + $0x110] sm:$0xff]
    %v56 = vld [vmem:[%s0 + $0x118] sm:$0xff]
    %v57 = vld [vmem:[%s0 + $0x120] sm:$0xff]
    %v58 = vld [vmem:[%s0 + $0x128] sm:$0xff]
    %v59 = vld [vmem:[%s1] sm:$0xff]
    %v60 = vld [vmem:[%s1 + $0x8] sm:$0xff]
    %v61 = vld [vmem:[%s1 + $0x10] sm:$0xff]
    %v62 = vld [vmem:[%s1 + $0x18] sm:$0xff]
    %v63 = vld [vmem:[%s1 + $0x20] sm:$0xff]
    %v64 = vld [vmem:[%s1 + $0x28] sm:$0xff]
    %v65 = vld [vmem:[%s1 + $0x30] sm:$0xff]
    %v66 = vld [vmem:[%s1 + $0x38] sm:$0xff]
    %v67 = vld [vmem:[%s2] sm:$0x3]
    %v69 = vlaneseq
    %v70 = vshrl.u32 %v69, 7
    %v71 = vsub.s32 0, %v70
    %v72 = vrot.slane %v67, %v71
    %v73 = vlaneseq
    %v74 = vshrl.u32 %v73, 7
    %v75 = vsub.s32 1, %v74
    %v76 = vrot.slane %v67, %v75
    %vm79 = vcmask 261120
    %v81 = vsel %vm79, %v21, 0
    %v84 = vsel %vm79, %v22, 0
    %v87 = vsel %vm79, %v23, 0
    %v90 = vsel %vm79, %v24, 0
    %v93 = vsel %vm79, %v25, 0
    %v96 = vsel %vm79, %v26, 0
    %v99 = vsel %vm79, %v27, 0
    %v102 = vsel %vm79, %v28, 0
    %v105 = vsel %vm79, %v29, 0
    %v108 = vsel %vm79, %v30, 0
    %v111 = vsel %vm79, %v31, 0
    %v114 = vsel %vm79, %v32, 0
    %v117 = vsel %vm79, %v33, 0
    %v120 = vsel %vm79, %v34, 0
    %v123 = vsel %vm79, %v35, 0
    %v126 = vsel %vm79, %v36, 0
    %v129 = vsel %vm79, %v37, 0
    %v132 = vsel %vm79, %v38, 0
    %v135 = vsel %vm79, %v39, 0
    %v138 = vsel %vm79, %v40, 0
    %v141 = vsel %vm79, %v41, 0
    %v144 = vsel %vm79, %v42, 0
    %v147 = vsel %vm79, %v43, 0
    %v150 = vsel %vm79, %v44, 0
    %v153 = vsel %vm79, %v45, 0
    %v156 = vsel %vm79, %v46, 0
    %v159 = vsel %vm79, %v47, 0
    %v162 = vsel %vm79, %v48, 0
    %v165 = vsel %vm79, %v49, 0
    %v168 = vsel %vm79, %v50, 0
    %v171 = vsel %vm79, %v51, 0
    %v174 = vsel %vm79, %v52, 0
    %v177 = vsel %vm79, %v53, 0
    %v180 = vsel %vm79, %v54, 0
    %v183 = vsel %vm79, %v55, 0
    %v186 = vsel %vm79, %v56, 0
    %v189 = vsel %vm79, %v57, 0
    %v192 = vsel %vm79, %v58, 0
    %194 = vmatprep.subr.mxu0 %v60
    %195 = vmatpush1.msra.mxu0 %v59
    %196 = vmatprep.subr.mxu0 %v62
    %197 = vmatpush1.msra.mxu0 %v61
    %198 = vmatprep.subr.mxu0 %v64
    %199 = vmatpush1.msra.mxu0 %v63
    %200 = vmatprep.subr.mxu0 %v66
    %201 = vmatpush1.msra.mxu0 %v65
    %202 = vmatprep.subr.mxu0 0.0
    %203 = vmatpush1.msra.mxu0 0.0
    %204 = vmatprep.subr.mxu0 0.0
    %205 = vmatpush1.msra.mxu0 0.0
    %206 = vmatprep.subr.mxu0 0.0
    %207 = vmatpush1.msra.mxu0 0.0
    %208 = vmatprep.subr.mxu0 0.0
    %209 = vmatpush1.msra.mxu0 0.0
    %210 = vmatprep.subr.mxu0 0.0
    %211 = vmatpush1.msra.mxu0 0.0
    %212 = vmatprep.subr.mxu0 0.0
    %213 = vmatpush1.msra.mxu0 0.0
    %214 = vmatprep.subr.mxu0 0.0
    %215 = vmatpush1.msra.mxu0 0.0
    %216 = vmatprep.subr.mxu0 0.0
    %217 = vmatpush1.msra.mxu0 0.0
    %218 = vmatprep.subr.mxu0 0.0
    %219 = vmatpush1.msra.mxu0 0.0
    %220 = vmatprep.subr.mxu0 0.0
    %221 = vmatpush1.msra.mxu0 0.0
    %222 = vmatprep.subr.mxu0 0.0
    %223 = vmatpush1.msra.mxu0 0.0
    %224 = vmatprep.subr.mxu0 0.0
    %225 = vmatpush1.msra.mxu0 0.0
    %226 = vmatprep.subr.mxu0 0.0
    %227 = vmatpush1.msra.mxu0 0.0
    %228 = vmatprep.subr.mxu0 0.0
    %229 = vmatpush1.msra.mxu0 0.0
    %230 = vmatprep.subr.mxu0 0.0
    %231 = vmatpush1.msra.mxu0 0.0
    %232 = vmatprep.subr.mxu0 0.0
    %233 = vmatpush1.msra.mxu0 0.0
    %234 = vmatprep.subr.mxu0 0.0
    %235 = vmatpush1.msra.mxu0 0.0
    %236 = vmatprep.subr.mxu0 0.0
    %237 = vmatpush1.msra.mxu0 0.0
    %238 = vmatprep.subr.mxu0 0.0
    %239 = vmatpush1.msra.mxu0 0.0
    %240 = vmatprep.subr.mxu0 0.0
    %241 = vmatpush1.msra.mxu0 0.0
    %242 = vmatprep.subr.mxu0 0.0
    %243 = vmatpush1.msra.mxu0 0.0
    %244 = vmatprep.subr.mxu0 0.0
    %245 = vmatpush1.msra.mxu0 0.0
    %246 = vmatprep.subr.mxu0 0.0
    %247 = vmatpush1.msra.mxu0 0.0
    %248 = vmatprep.subr.mxu0 0.0
    %249 = vmatpush1.msra.mxu0 0.0
    %250 = vmatprep.subr.mxu0 0.0
    %251 = vmatpush1.msra.mxu0 0.0
    %252 = vmatprep.subr.mxu0 0.0
    %253 = vmatpush1.msra.mxu0 0.0
    %254 = vmatprep.subr.mxu0 0.0
    %255 = vmatpush1.msra.mxu0 0.0
    %256 = vmatprep.subr.mxu0 0.0
    %257 = vmatpush1.msra.mxu0 0.0
    %258 = vmatprep.mubr.f32.mxu0 0.0
    %259 = vmatmul.mubr.f32.gmra.mrb[0].mxu0 %v81
    %v260 = vpop.f32.mrb[0].mxu0
    %v261 = vadd.f32 %v72, %v260
    %v262 = vpop.f32.mrb[0].mxu0
    %v263 = vadd.f32 %v76, %v262
    %264 = vmatprep.mubr.f32.mxu0 0.0
    %265 = vmatmul.mubr.f32.gmra.mrb[0].mxu0 %v84
    %v266 = vpop.f32.mrb[0].mxu0
    %v267 = vadd.f32 %v72, %v266
    %v268 = vpop.f32.mrb[0].mxu0
    %v269 = vadd.f32 %v76, %v268
    %270 = vmatprep.mubr.f32.mxu0 0.0
    %271 = vmatmul.mubr.f32.gmra.mrb[0].mxu0 %v87
    %v272 = vpop.f32.mrb[0].mxu0
    %v273 = vadd.f32 %v72, %v272
    %v274 = vpop.f32.mrb[0].mxu0
    %v275 = vadd.f32 %v76, %v274
    %276 = vmatprep.mubr.f32.mxu0 0.0
    %277 = vmatmul.mubr.f32.gmra.mrb[0].mxu0 %v90
    %v278 = vpop.f32.mrb[0].mxu0
    %v279 = vadd.f32 %v72, %v278
    %v280 = vpop.f32.mrb[0].mxu0
    %v281 = vadd.f32 %v76, %v280
    %282 = vmatprep.mubr.f32.mxu0 0.0
    %283 = vmatmul.mubr.f32.gmra.mrb[0].mxu0 %v93
    %v284 = vpop.f32.mrb[0].mxu0
    %v285 = vadd.f32 %v72, %v284
    %v286 = vpop.f32.mrb[0].mxu0
    %v287 = vadd.f32 %v76, %v286
    %288 = vmatprep.mubr.f32.mxu0 0.0
    %289 = vmatmul.mubr.f32.gmra.mrb[0].mxu0 %v96
    %v290 = vpop.f32.mrb[0].mxu0
    %v291 = vadd.f32 %v72, %v290
    %v292 = vpop.f32.mrb[0].mxu0
    %v293 = vadd.f32 %v76, %v292
    %294 = vmatprep.mubr.f32.mxu0 0.0
    %295 = vmatmul.mubr.f32.gmra.mrb[0].mxu0 %v99
    %v296 = vpop.f32.mrb[0].mxu0
    %v297 = vadd.f32 %v72, %v296
    %v298 = vpop.f32.mrb[0].mxu0
    %v299 = vadd.f32 %v76, %v298
    %300 = vmatprep.mubr.f32.mxu0 0.0
    %301 = vmatmul.mubr.f32.gmra.mrb[0].mxu0 %v102
    %v302 = vpop.f32.mrb[0].mxu0
    %v303 = vadd.f32 %v72, %v302
    %v304 = vpop.f32.mrb[0].mxu0
    %v305 = vadd.f32 %v76, %v304
    %306 = vmatprep.mubr.f32.mxu0 0.0
    %307 = vmatmul.mubr.f32.gmra.mrb[0].mxu0 %v105
    %v308 = vpop.f32.mrb[0].mxu0
    %v309 = vadd.f32 %v72, %v308
    %v310 = vpop.f32.mrb[0].mxu0
    %v311 = vadd.f32 %v76, %v310
    %312 = vmatprep.mubr.f32.mxu0 0.0
    %313 = vmatmul.mubr.f32.gmra.mrb[0].mxu0 %v108
    %v314 = vpop.f32.mrb[0].mxu0
    %v315 = vadd.f32 %v72, %v314
    %v316 = vpop.f32.mrb[0].mxu0
    %v317 = vadd.f32 %v76, %v316
    %318 = vmatprep.mubr.f32.mxu0 0.0
    %319 = vmatmul.mubr.f32.gmra.mrb[0].mxu0 %v111
    %v320 = vpop.f32.mrb[0].mxu0
    %v321 = vadd.f32 %v72, %v320
    %v322 = vpop.f32.mrb[0].mxu0
    %v323 = vadd.f32 %v76, %v322
    %324 = vmatprep.mubr.f32.mxu0 0.0
    %325 = vmatmul.mubr.f32.gmra.mrb[0].mxu0 %v114
    %v326 = vpop.f32.mrb[0].mxu0
    %v327 = vadd.f32 %v72, %v326
    %v328 = vpop.f32.mrb[0].mxu0
    %v329 = vadd.f32 %v76, %v328
    %330 = vmatprep.mubr.f32.mxu0 0.0
    %331 = vmatmul.mubr.f32.gmra.mrb[0].mxu0 %v117
    %v332 = vpop.f32.mrb[0].mxu0
    %v333 = vadd.f32 %v72, %v332
    %v334 = vpop.f32.mrb[0].mxu0
    %v335 = vadd.f32 %v76, %v334
    %336 = vmatprep.mubr.f32.mxu0 0.0
    %337 = vmatmul.mubr.f32.gmra.mrb[0].mxu0 %v120
    %v338 = vpop.f32.mrb[0].mxu0
    %v339 = vadd.f32 %v72, %v338
    %v340 = vpop.f32.mrb[0].mxu0
    %v341 = vadd.f32 %v76, %v340
    %342 = vmatprep.mubr.f32.mxu0 0.0
    %343 = vmatmul.mubr.f32.gmra.mrb[0].mxu0 %v123
    %v344 = vpop.f32.mrb[0].mxu0
    %v345 = vadd.f32 %v72, %v344
    %v346 = vpop.f32.mrb[0].mxu0
    %v347 = vadd.f32 %v76, %v346
    %348 = vmatprep.mubr.f32.mxu0 0.0
    %349 = vmatmul.mubr.f32.gmra.mrb[0].mxu0 %v126
    %v350 = vpop.f32.mrb[0].mxu0
    %v351 = vadd.f32 %v72, %v350
    %v352 = vpop.f32.mrb[0].mxu0
    %v353 = vadd.f32 %v76, %v352
    %354 = vmatprep.mubr.f32.mxu0 0.0
    %355 = vmatmul.mubr.f32.gmra.mrb[0].mxu0 %v129
    %v356 = vpop.f32.mrb[0].mxu0
    %v357 = vadd.f32 %v72, %v356
    %v358 = vpop.f32.mrb[0].mxu0
    %v359 = vadd.f32 %v76, %v358
    %360 = vmatprep.mubr.f32.mxu0 0.0
    %361 = vmatmul.mubr.f32.gmra.mrb[0].mxu0 %v132
    %v362 = vpop.f32.mrb[0].mxu0
    %v363 = vadd.f32 %v72, %v362
    %v364 = vpop.f32.mrb[0].mxu0
    %v365 = vadd.f32 %v76, %v364
    %366 = vmatprep.mubr.f32.mxu0 0.0
    %367 = vmatmul.mubr.f32.gmra.mrb[0].mxu0 %v135
    %v368 = vpop.f32.mrb[0].mxu0
    %v369 = vadd.f32 %v72, %v368
    %v370 = vpop.f32.mrb[0].mxu0
    %v371 = vadd.f32 %v76, %v370
    %372 = vmatprep.mubr.f32.mxu0 0.0
    %373 = vmatmul.mubr.f32.gmra.mrb[0].mxu0 %v138
    %v374 = vpop.f32.mrb[0].mxu0
    %v375 = vadd.f32 %v72, %v374
    %v376 = vpop.f32.mrb[0].mxu0
    %v377 = vadd.f32 %v76, %v376
    %378 = vmatprep.mubr.f32.mxu0 0.0
    %379 = vmatmul.mubr.f32.gmra.mrb[0].mxu0 %v141
    %v380 = vpop.f32.mrb[0].mxu0
    %v381 = vadd.f32 %v72, %v380
    %v382 = vpop.f32.mrb[0].mxu0
    %v383 = vadd.f32 %v76, %v382
    %384 = vmatprep.mubr.f32.mxu0 0.0
    %385 = vmatmul.mubr.f32.gmra.mrb[0].mxu0 %v144
    %v386 = vpop.f32.mrb[0].mxu0
    %v387 = vadd.f32 %v72, %v386
    %v388 = vpop.f32.mrb[0].mxu0
    %v389 = vadd.f32 %v76, %v388
    %390 = vmatprep.mubr.f32.mxu0 0.0
    %391 = vmatmul.mubr.f32.gmra.mrb[0].mxu0 %v147
    %v392 = vpop.f32.mrb[0].mxu0
    %v393 = vadd.f32 %v72, %v392
    %v394 = vpop.f32.mrb[0].mxu0
    %v395 = vadd.f32 %v76, %v394
    %396 = vmatprep.mubr.f32.mxu0 0.0
    %397 = vmatmul.mubr.f32.gmra.mrb[0].mxu0 %v150
    %v398 = vpop.f32.mrb[0].mxu0
    %v399 = vadd.f32 %v72, %v398
    %v400 = vpop.f32.mrb[0].mxu0
    %v401 = vadd.f32 %v76, %v400
    %402 = vmatprep.mubr.f32.mxu0 0.0
    %403 = vmatmul.mubr.f32.gmra.mrb[0].mxu0 %v153
    %v404 = vpop.f32.mrb[0].mxu0
    %v405 = vadd.f32 %v72, %v404
    %v406 = vpop.f32.mrb[0].mxu0
    %v407 = vadd.f32 %v76, %v406
    %408 = vmatprep.mubr.f32.mxu0 0.0
    %409 = vmatmul.mubr.f32.gmra.mrb[0].mxu0 %v156
    %v410 = vpop.f32.mrb[0].mxu0
    %v411 = vadd.f32 %v72, %v410
    %v412 = vpop.f32.mrb[0].mxu0
    %v413 = vadd.f32 %v76, %v412
    %414 = vmatprep.mubr.f32.mxu0 0.0
    %415 = vmatmul.mubr.f32.gmra.mrb[0].mxu0 %v159
    %v416 = vpop.f32.mrb[0].mxu0
    %v417 = vadd.f32 %v72, %v416
    %v418 = vpop.f32.mrb[0].mxu0
    %v419 = vadd.f32 %v76, %v418
    %420 = vmatprep.mubr.f32.mxu0 0.0
    %421 = vmatmul.mubr.f32.gmra.mrb[0].mxu0 %v162
    %v422 = vpop.f32.mrb[0].mxu0
    %v423 = vadd.f32 %v72, %v422
    %v424 = vpop.f32.mrb[0].mxu0
    %v425 = vadd.f32 %v76, %v424
    %426 = vmatprep.mubr.f32.mxu0 0.0
    %427 = vmatmul.mubr.f32.gmra.mrb[0].mxu0 %v165
    %v428 = vpop.f32.mrb[0].mxu0
    %v429 = vadd.f32 %v72, %v428
    %v430 = vpop.f32.mrb[0].mxu0
    %v431 = vadd.f32 %v76, %v430
    %432 = vmatprep.mubr.f32.mxu0 0.0
    %433 = vmatmul.mubr.f32.gmra.mrb[0].mxu0 %v168
    %v434 = vpop.f32.mrb[0].mxu0
    %v435 = vadd.f32 %v72, %v434
    %v436 = vpop.f32.mrb[0].mxu0
    %v437 = vadd.f32 %v76, %v436
    %438 = vmatprep.mubr.f32.mxu0 0.0
    %439 = vmatmul.mubr.f32.gmra.mrb[0].mxu0 %v171
    %v440 = vpop.f32.mrb[0].mxu0
    %v441 = vadd.f32 %v72, %v440
    %v442 = vpop.f32.mrb[0].mxu0
    %v443 = vadd.f32 %v76, %v442
    %444 = vmatprep.mubr.f32.mxu0 0.0
    %445 = vmatmul.mubr.f32.gmra.mrb[0].mxu0 %v174
    %v446 = vpop.f32.mrb[0].mxu0
    %v447 = vadd.f32 %v72, %v446
    %v448 = vpop.f32.mrb[0].mxu0
    %v449 = vadd.f32 %v76, %v448
    %450 = vmatprep.mubr.f32.mxu0 0.0
    %451 = vmatmul.mubr.f32.gmra.mrb[0].mxu0 %v177
    %v452 = vpop.f32.mrb[0].mxu0
    %v453 = vadd.f32 %v72, %v452
    %v454 = vpop.f32.mrb[0].mxu0
    %v455 = vadd.f32 %v76, %v454
    %456 = vmatprep.mubr.f32.mxu0 0.0
    %457 = vmatmul.mubr.f32.gmra.mrb[0].mxu0 %v180
    %v458 = vpop.f32.mrb[0].mxu0
    %v459 = vadd.f32 %v72, %v458
    %v460 = vpop.f32.mrb[0].mxu0
    %v461 = vadd.f32 %v76, %v460
    %462 = vmatprep.mubr.f32.mxu0 0.0
    %463 = vmatmul.mubr.f32.gmra.mrb[0].mxu0 %v183
    %v464 = vpop.f32.mrb[0].mxu0
    %v465 = vadd.f32 %v72, %v464
    %v466 = vpop.f32.mrb[0].mxu0
    %v467 = vadd.f32 %v76, %v466
    %468 = vmatprep.mubr.f32.mxu0 0.0
    %469 = vmatmul.mubr.f32.gmra.mrb[0].mxu0 %v186
    %v470 = vpop.f32.mrb[0].mxu0
    %v471 = vadd.f32 %v72, %v470
    %v472 = vpop.f32.mrb[0].mxu0
    %v473 = vadd.f32 %v76, %v472
    %474 = vmatprep.mubr.f32.mxu0 0.0
    %475 = vmatmul.mubr.f32.gmra.mrb[0].mxu0 %v189
    %v476 = vpop.f32.mrb[0].mxu0
    %v477 = vadd.f32 %v72, %v476
    %v478 = vpop.f32.mrb[0].mxu0
    %v479 = vadd.f32 %v76, %v478
    %480 = vmatprep.mubr.f32.mxu0 0.0
    %481 = vmatmul.mubr.f32.gmra.mrb[0].mxu0 %v192
    %v482 = vpop.f32.mrb[0].mxu0
    %v483 = vadd.f32 %v72, %v482
    %v484 = vpop.f32.mrb[0].mxu0
    %v485 = vadd.f32 %v76, %v484
    %486 = vdwg.mxu0
    %v487 = vmax.f32 %v261, 0.0
    %v488 = vmax.f32 %v263, 0.0
    %v489 = vmax.f32 %v267, 0.0
    %v490 = vmax.f32 %v269, 0.0
    %v491 = vmax.f32 %v273, 0.0
    %v492 = vmax.f32 %v275, 0.0
    %v493 = vmax.f32 %v279, 0.0
    %v494 = vmax.f32 %v281, 0.0
    %v495 = vmax.f32 %v285, 0.0
    %v496 = vmax.f32 %v287, 0.0
    %v497 = vmax.f32 %v291, 0.0
    %v498 = vmax.f32 %v293, 0.0
    %v499 = vmax.f32 %v297, 0.0
    %v500 = vmax.f32 %v299, 0.0
    %v501 = vmax.f32 %v303, 0.0
    %v502 = vmax.f32 %v305, 0.0
    %v503 = vmax.f32 %v309, 0.0
    %v504 = vmax.f32 %v311, 0.0
    %v505 = vmax.f32 %v315, 0.0
    %v506 = vmax.f32 %v317, 0.0
    %v507 = vmax.f32 %v321, 0.0
    %v508 = vmax.f32 %v323, 0.0
    %v509 = vmax.f32 %v327, 0.0
    %v510 = vmax.f32 %v329, 0.0
    %v511 = vmax.f32 %v333, 0.0
    %v512 = vmax.f32 %v335, 0.0
    %v513 = vmax.f32 %v339, 0.0
    %v514 = vmax.f32 %v341, 0.0
    %v515 = vmax.f32 %v345, 0.0
    %v516 = vmax.f32 %v347, 0.0
    %v517 = vmax.f32 %v351, 0.0
    %v518 = vmax.f32 %v353, 0.0
    %v519 = vmax.f32 %v357, 0.0
    %v520 = vmax.f32 %v359, 0.0
    %v521 = vmax.f32 %v363, 0.0
    %v522 = vmax.f32 %v365, 0.0
    %v523 = vmax.f32 %v369, 0.0
    %v524 = vmax.f32 %v371, 0.0
    %v525 = vmax.f32 %v375, 0.0
    %v526 = vmax.f32 %v377, 0.0
    %v527 = vmax.f32 %v381, 0.0
    %v528 = vmax.f32 %v383, 0.0
    %v529 = vmax.f32 %v387, 0.0
    %v530 = vmax.f32 %v389, 0.0
    %v531 = vmax.f32 %v393, 0.0
    %v532 = vmax.f32 %v395, 0.0
    %v533 = vmax.f32 %v399, 0.0
    %v534 = vmax.f32 %v401, 0.0
    %v535 = vmax.f32 %v405, 0.0
    %v536 = vmax.f32 %v407, 0.0
    %v537 = vmax.f32 %v411, 0.0
    %v538 = vmax.f32 %v413, 0.0
    %v539 = vmax.f32 %v417, 0.0
    %v540 = vmax.f32 %v419, 0.0
    %v541 = vmax.f32 %v423, 0.0
    %v542 = vmax.f32 %v425, 0.0
    %v543 = vmax.f32 %v429, 0.0
    %v544 = vmax.f32 %v431, 0.0
    %v545 = vmax.f32 %v435, 0.0
    %v546 = vmax.f32 %v437, 0.0
    %v547 = vmax.f32 %v441, 0.0
    %v548 = vmax.f32 %v443, 0.0
    %v549 = vmax.f32 %v447, 0.0
    %v550 = vmax.f32 %v449, 0.0
    %v551 = vmax.f32 %v453, 0.0
    %v552 = vmax.f32 %v455, 0.0
    %v553 = vmax.f32 %v459, 0.0
    %v554 = vmax.f32 %v461, 0.0
    %v555 = vmax.f32 %v465, 0.0
    %v556 = vmax.f32 %v467, 0.0
    %v557 = vmax.f32 %v471, 0.0
    %v558 = vmax.f32 %v473, 0.0
    %v559 = vmax.f32 %v477, 0.0
    %v560 = vmax.f32 %v479, 0.0
    %v561 = vmax.f32 %v483, 0.0
    %v562 = vmax.f32 %v485, 0.0
    %v563 = vld [vmem:[%s3] sm:$0xff]
    %v564 = vld [vmem:[%s3 + $0x8] sm:$0xff]
    %v565 = vld [vmem:[%s3 + $0x10] sm:$0xff]
    %v566 = vld [vmem:[%s3 + $0x18] sm:$0xff]
    %v567 = vld [vmem:[%s3 + $0x20] sm:$0xff]
    %v568 = vld [vmem:[%s3 + $0x28] sm:$0xff]
    %v569 = vld [vmem:[%s3 + $0x30] sm:$0xff]
    %v570 = vld [vmem:[%s3 + $0x38] sm:$0xff]
    %v571 = vld [vmem:[%s3 + $0x40] sm:$0xff]
    %v572 = vld [vmem:[%s3 + $0x48] sm:$0xff]
    %v573 = vld [vmem:[%s3 + $0x50] sm:$0xff]
    %v574 = vld [vmem:[%s3 + $0x58] sm:$0xff]
    %v575 = vld [vmem:[%s3 + $0x60] sm:$0xff]
    %v576 = vld [vmem:[%s3 + $0x68] sm:$0xff]
    %v577 = vld [vmem:[%s3 + $0x70] sm:$0xff]
    %v578 = vld [vmem:[%s3 + $0x78] sm:$0xff]
    %v579 = vld [vmem:[%s3 + $0x80] sm:$0xff]
    %v580 = vld [vmem:[%s3 + $0x88] sm:$0xff]
    %v581 = vld [vmem:[%s3 + $0x90] sm:$0xff]
    %v582 = vld [vmem:[%s3 + $0x98] sm:$0xff]
    %v583 = vld [vmem:[%s3 + $0xa0] sm:$0xff]
    %v584 = vld [vmem:[%s3 + $0xa8] sm:$0xff]
    %v585 = vld [vmem:[%s3 + $0xb0] sm:$0xff]
    %v586 = vld [vmem:[%s3 + $0xb8] sm:$0xff]
    %v587 = vld [vmem:[%s3 + $0xc0] sm:$0xff]
    %v588 = vld [vmem:[%s3 + $0xc8] sm:$0xff]
    %v589 = vld [vmem:[%s3 + $0xd0] sm:$0xff]
    %v590 = vld [vmem:[%s3 + $0xd8] sm:$0xff]
    %v591 = vld [vmem:[%s3 + $0xe0] sm:$0xff]
    %v592 = vld [vmem:[%s3 + $0xe8] sm:$0xff]
    %v593 = vld [vmem:[%s3 + $0xf0] sm:$0xff]
    %v594 = vld [vmem:[%s3 + $0xf8] sm:$0xff]
    %v595 = vld [vmem:[%s4] sm:$0x1]
    %v597 = vlaneseq
    %v598 = vshrl.u32 %v597, 7
    %v599 = vsub.s32 0, %v598
    %v600 = vrot.slane %v595, %v599
    %602 = vmatprep.subr.mxu0 0.0
    %603 = vmatpush1.msra.mxu0 %v563
    %604 = vmatprep.subr.mxu0 0.0
    %605 = vmatpush1.msra.mxu0 %v564
    %606 = vmatprep.subr.mxu0 0.0
    %607 = vmatpush1.msra.mxu0 %v565
    %608 = vmatprep.subr.mxu0 0.0
    %609 = vmatpush1.msra.mxu0 %v566
    %610 = vmatprep.subr.mxu0 0.0
    %611 = vmatpush1.msra.mxu0 %v567
    %612 = vmatprep.subr.mxu0 0.0
    %613 = vmatpush1.msra.mxu0 %v568
    %614 = vmatprep.subr.mxu0 0.0
    %615 = vmatpush1.msra.mxu0 %v569
    %616 = vmatprep.subr.mxu0 0.0
    %617 = vmatpush1.msra.mxu0 %v570
    %618 = vmatprep.subr.mxu0 0.0
    %619 = vmatpush1.msra.mxu0 %v571
    %620 = vmatprep.subr.mxu0 0.0
    %621 = vmatpush1.msra.mxu0 %v572
    %622 = vmatprep.subr.mxu0 0.0
    %623 = vmatpush1.msra.mxu0 %v573
    %624 = vmatprep.subr.mxu0 0.0
    %625 = vmatpush1.msra.mxu0 %v574
    %626 = vmatprep.subr.mxu0 0.0
    %627 = vmatpush1.msra.mxu0 %v575
    %628 = vmatprep.subr.mxu0 0.0
    %629 = vmatpush1.msra.mxu0 %v576
    %630 = vmatprep.subr.mxu0 0.0
    %631 = vmatpush1.msra.mxu0 %v577
    %632 = vmatprep.subr.mxu0 0.0
    %633 = vmatpush1.msra.mxu0 %v578
    %634 = vmatprep.subr.mxu0 0.0
    %635 = vmatpush1.msra.mxu0 %v579
    %636 = vmatprep.subr.mxu0 0.0
    %637 = vmatpush1.msra.mxu0 %v580
    %638 = vmatprep.subr.mxu0 0.0
    %639 = vmatpush1.msra.mxu0 %v581
    %640 = vmatprep.subr.mxu0 0.0
    %641 = vmatpush1.msra.mxu0 %v582
    %642 = vmatprep.subr.mxu0 0.0
    %643 = vmatpush1.msra.mxu0 %v583
    %644 = vmatprep.subr.mxu0 0.0
    %645 = vmatpush1.msra.mxu0 %v584
    %646 = vmatprep.subr.mxu0 0.0
    %647 = vmatpush1.msra.mxu0 %v585
    %648 = vmatprep.subr.mxu0 0.0
    %649 = vmatpush1.msra.mxu0 %v586
    %650 = vmatprep.subr.mxu0 0.0
    %651 = vmatpush1.msra.mxu0 %v587
    %652 = vmatprep.subr.mxu0 0.0
    %653 = vmatpush1.msra.mxu0 %v588
    %654 = vmatprep.subr.mxu0 0.0
    %655 = vmatpush1.msra.mxu0 %v589
    %656 = vmatprep.subr.mxu0 0.0
    %657 = vmatpush1.msra.mxu0 %v590
    %658 = vmatprep.subr.mxu0 0.0
    %659 = vmatpush1.msra.mxu0 %v591
    %660 = vmatprep.subr.mxu0 0.0
    %661 = vmatpush1.msra.mxu0 %v592
    %662 = vmatprep.subr.mxu0 0.0
    %663 = vmatpush1.msra.mxu0 %v593
    %664 = vmatprep.subr.mxu0 0.0
    %665 = vmatpush1.msra.mxu0 %v594
    %666 = vmatprep.mubr.f32.mxu0 %v488
    %667 = vmatmul.mubr.f32.gmra.mrb[0].mxu0 %v487
    %v668 = vpop.f32.mrb[0].mxu0
    %v669 = vadd.f32 %v600, %v668
    %v670 = vpop.f32.mrb[0].mxu0
    %671 = vmatprep.mubr.f32.mxu0 %v490
    %672 = vmatmul.mubr.f32.gmra.mrb[0].mxu0 %v489
    %v673 = vpop.f32.mrb[0].mxu0
    %v674 = vadd.f32 %v600, %v673
    %v675 = vpop.f32.mrb[0].mxu0
    %676 = vmatprep.mubr.f32.mxu0 %v492
    %677 = vmatmul.mubr.f32.gmra.mrb[0].mxu0 %v491
    %v678 = vpop.f32.mrb[0].mxu0
    %v679 = vadd.f32 %v600, %v678
    %v680 = vpop.f32.mrb[0].mxu0
    %681 = vmatprep.mubr.f32.mxu0 %v494
    %682 = vmatmul.mubr.f32.gmra.mrb[0].mxu0 %v493
    %v683 = vpop.f32.mrb[0].mxu0
    %v684 = vadd.f32 %v600, %v683
    %v685 = vpop.f32.mrb[0].mxu0
    %686 = vmatprep.mubr.f32.mxu0 %v496
    %687 = vmatmul.mubr.f32.gmra.mrb[0].mxu0 %v495
    %v688 = vpop.f32.mrb[0].mxu0
    %v689 = vadd.f32 %v600, %v688
    %v690 = vpop.f32.mrb[0].mxu0
    %691 = vmatprep.mubr.f32.mxu0 %v498
    %692 = vmatmul.mubr.f32.gmra.mrb[0].mxu0 %v497
    %v693 = vpop.f32.mrb[0].mxu0
    %v694 = vadd.f32 %v600, %v693
    %v695 = vpop.f32.mrb[0].mxu0
    %696 = vmatprep.mubr.f32.mxu0 %v500
    %697 = vmatmul.mubr.f32.gmra.mrb[0].mxu0 %v499
    %v698 = vpop.f32.mrb[0].mxu0
    %v699 = vadd.f32 %v600, %v698
    %v700 = vpop.f32.mrb[0].mxu0
    %701 = vmatprep.mubr.f32.mxu0 %v502
    %702 = vmatmul.mubr.f32.gmra.mrb[0].mxu0 %v501
    %v703 = vpop.f32.mrb[0].mxu0
    %v704 = vadd.f32 %v600, %v703
    %v705 = vpop.f32.mrb[0].mxu0
    %706 = vmatprep.mubr.f32.mxu0 %v504
    %707 = vmatmul.mubr.f32.gmra.mrb[0].mxu0 %v503
    %v708 = vpop.f32.mrb[0].mxu0
    %v709 = vadd.f32 %v600, %v708
    %v710 = vpop.f32.mrb[0].mxu0
    %711 = vmatprep.mubr.f32.mxu0 %v506
    %712 = vmatmul.mubr.f32.gmra.mrb[0].mxu0 %v505
    %v713 = vpop.f32.mrb[0].mxu0
    %v714 = vadd.f32 %v600, %v713
    %v715 = vpop.f32.mrb[0].mxu0
    %716 = vmatprep.mubr.f32.mxu0 %v508
    %717 = vmatmul.mubr.f32.gmra.mrb[0].mxu0 %v507
    %v718 = vpop.f32.mrb[0].mxu0
    %v719 = vadd.f32 %v600, %v718
    %v720 = vpop.f32.mrb[0].mxu0
    %721 = vmatprep.mubr.f32.mxu0 %v510
    %722 = vmatmul.mubr.f32.gmra.mrb[0].mxu0 %v509
    %v723 = vpop.f32.mrb[0].mxu0
    %v724 = vadd.f32 %v600, %v723
    %v725 = vpop.f32.mrb[0].mxu0
    %726 = vmatprep.mubr.f32.mxu0 %v512
    %727 = vmatmul.mubr.f32.gmra.mrb[0].mxu0 %v511
    %v728 = vpop.f32.mrb[0].mxu0
    %v729 = vadd.f32 %v600, %v728
    %v730 = vpop.f32.mrb[0].mxu0
    %731 = vmatprep.mubr.f32.mxu0 %v514
    %732 = vmatmul.mubr.f32.gmra.mrb[0].mxu0 %v513
    %v733 = vpop.f32.mrb[0].mxu0
    %v734 = vadd.f32 %v600, %v733
    %v735 = vpop.f32.mrb[0].mxu0
    %736 = vmatprep.mubr.f32.mxu0 %v516
    %737 = vmatmul.mubr.f32.gmra.mrb[0].mxu0 %v515
    %v738 = vpop.f32.mrb[0].mxu0
    %v739 = vadd.f32 %v600, %v738
    %v740 = vpop.f32.mrb[0].mxu0
    %741 = vmatprep.mubr.f32.mxu0 %v518
    %742 = vmatmul.mubr.f32.gmra.mrb[0].mxu0 %v517
    %v743 = vpop.f32.mrb[0].mxu0
    %v744 = vadd.f32 %v600, %v743
    %v745 = vpop.f32.mrb[0].mxu0
    %746 = vmatprep.mubr.f32.mxu0 %v520
    %747 = vmatmul.mubr.f32.gmra.mrb[0].mxu0 %v519
    %v748 = vpop.f32.mrb[0].mxu0
    %v749 = vadd.f32 %v600, %v748
    %v750 = vpop.f32.mrb[0].mxu0
    %751 = vmatprep.mubr.f32.mxu0 %v522
    %752 = vmatmul.mubr.f32.gmra.mrb[0].mxu0 %v521
    %v753 = vpop.f32.mrb[0].mxu0
    %v754 = vadd.f32 %v600, %v753
    %v755 = vpop.f32.mrb[0].mxu0
    %756 = vmatprep.mubr.f32.mxu0 %v524
    %757 = vmatmul.mubr.f32.gmra.mrb[0].mxu0 %v523
    %v758 = vpop.f32.mrb[0].mxu0
    %v759 = vadd.f32 %v600, %v758
    %v760 = vpop.f32.mrb[0].mxu0
    %761 = vmatprep.mubr.f32.mxu0 %v526
    %762 = vmatmul.mubr.f32.gmra.mrb[0].mxu0 %v525
    %v763 = vpop.f32.mrb[0].mxu0
    %v764 = vadd.f32 %v600, %v763
    %v765 = vpop.f32.mrb[0].mxu0
    %766 = vmatprep.mubr.f32.mxu0 %v528
    %767 = vmatmul.mubr.f32.gmra.mrb[0].mxu0 %v527
    %v768 = vpop.f32.mrb[0].mxu0
    %v769 = vadd.f32 %v600, %v768
    %v770 = vpop.f32.mrb[0].mxu0
    %771 = vmatprep.mubr.f32.mxu0 %v530
    %772 = vmatmul.mubr.f32.gmra.mrb[0].mxu0 %v529
    %v773 = vpop.f32.mrb[0].mxu0
    %v774 = vadd.f32 %v600, %v773
    %v775 = vpop.f32.mrb[0].mxu0
    %776 = vmatprep.mubr.f32.mxu0 %v532
    %777 = vmatmul.mubr.f32.gmra.mrb[0].mxu0 %v531
    %v778 = vpop.f32.mrb[0].mxu0
    %v779 = vadd.f32 %v600, %v778
    %v780 = vpop.f32.mrb[0].mxu0
    %781 = vmatprep.mubr.f32.mxu0 %v534
    %782 = vmatmul.mubr.f32.gmra.mrb[0].mxu0 %v533
    %v783 = vpop.f32.mrb[0].mxu0
    %v784 = vadd.f32 %v600, %v783
    %v785 = vpop.f32.mrb[0].mxu0
    %786 = vmatprep.mubr.f32.mxu0 %v536
    %787 = vmatmul.mubr.f32.gmra.mrb[0].mxu0 %v535
    %v788 = vpop.f32.mrb[0].mxu0
    %v789 = vadd.f32 %v600, %v788
    %v790 = vpop.f32.mrb[0].mxu0
    %791 = vmatprep.mubr.f32.mxu0 %v538
    %792 = vmatmul.mubr.f32.gmra.mrb[0].mxu0 %v537
    %v793 = vpop.f32.mrb[0].mxu0
    %v794 = vadd.f32 %v600, %v793
    %v795 = vpop.f32.mrb[0].mxu0
    %796 = vmatprep.mubr.f32.mxu0 %v540
    %797 = vmatmul.mubr.f32.gmra.mrb[0].mxu0 %v539
    %v798 = vpop.f32.mrb[0].mxu0
    %v799 = vadd.f32 %v600, %v798
    %v800 = vpop.f32.mrb[0].mxu0
    %801 = vmatprep.mubr.f32.mxu0 %v542
    %802 = vmatmul.mubr.f32.gmra.mrb[0].mxu0 %v541
    %v803 = vpop.f32.mrb[0].mxu0
    %v804 = vadd.f32 %v600, %v803
    %v805 = vpop.f32.mrb[0].mxu0
    %806 = vmatprep.mubr.f32.mxu0 %v544
    %807 = vmatmul.mubr.f32.gmra.mrb[0].mxu0 %v543
    %v808 = vpop.f32.mrb[0].mxu0
    %v809 = vadd.f32 %v600, %v808
    %v810 = vpop.f32.mrb[0].mxu0
    %811 = vmatprep.mubr.f32.mxu0 %v546
    %812 = vmatmul.mubr.f32.gmra.mrb[0].mxu0 %v545
    %v813 = vpop.f32.mrb[0].mxu0
    %v814 = vadd.f32 %v600, %v813
    %v815 = vpop.f32.mrb[0].mxu0
    %816 = vmatprep.mubr.f32.mxu0 %v548
    %817 = vmatmul.mubr.f32.gmra.mrb[0].mxu0 %v547
    %v818 = vpop.f32.mrb[0].mxu0
    %v819 = vadd.f32 %v600, %v818
    %v820 = vpop.f32.mrb[0].mxu0
    %821 = vmatprep.mubr.f32.mxu0 %v550
    %822 = vmatmul.mubr.f32.gmra.mrb[0].mxu0 %v549
    %v823 = vpop.f32.mrb[0].mxu0
    %v824 = vadd.f32 %v600, %v823
    %v825 = vpop.f32.mrb[0].mxu0
    %826 = vmatprep.mubr.f32.mxu0 %v552
    %827 = vmatmul.mubr.f32.gmra.mrb[0].mxu0 %v551
    %v828 = vpop.f32.mrb[0].mxu0
    %v829 = vadd.f32 %v600, %v828
    %v830 = vpop.f32.mrb[0].mxu0
    %831 = vmatprep.mubr.f32.mxu0 %v554
    %832 = vmatmul.mubr.f32.gmra.mrb[0].mxu0 %v553
    %v833 = vpop.f32.mrb[0].mxu0
    %v834 = vadd.f32 %v600, %v833
    %v835 = vpop.f32.mrb[0].mxu0
    %836 = vmatprep.mubr.f32.mxu0 %v556
    %837 = vmatmul.mubr.f32.gmra.mrb[0].mxu0 %v555
    %v838 = vpop.f32.mrb[0].mxu0
    %v839 = vadd.f32 %v600, %v838
    %v840 = vpop.f32.mrb[0].mxu0
    %841 = vmatprep.mubr.f32.mxu0 %v558
    %842 = vmatmul.mubr.f32.gmra.mrb[0].mxu0 %v557
    %v843 = vpop.f32.mrb[0].mxu0
    %v844 = vadd.f32 %v600, %v843
    %v845 = vpop.f32.mrb[0].mxu0
    %846 = vmatprep.mubr.f32.mxu0 %v560
    %847 = vmatmul.mubr.f32.gmra.mrb[0].mxu0 %v559
    %v848 = vpop.f32.mrb[0].mxu0
    %v849 = vadd.f32 %v600, %v848
    %v850 = vpop.f32.mrb[0].mxu0
    %851 = vmatprep.mubr.f32.mxu0 %v562
    %852 = vmatmul.mubr.f32.gmra.mrb[0].mxu0 %v561
    %v853 = vpop.f32.mrb[0].mxu0
    %v854 = vadd.f32 %v600, %v853
    %v855 = vpop.f32.mrb[0].mxu0
    %856 = vdwg.mxu0
    %857 = vst [vmem:[#allocation2] sm:$0xff] %v669
    %858 = vst [vmem:[#allocation2 + $0x8] sm:$0xff] %v674
    %859 = vst [vmem:[#allocation2 + $0x10] sm:$0xff] %v679
    %860 = vst [vmem:[#allocation2 + $0x18] sm:$0xff] %v684
    %861 = vst [vmem:[#allocation2 + $0x20] sm:$0xff] %v689
    %862 = vst [vmem:[#allocation2 + $0x28] sm:$0xff] %v694
    %863 = vst [vmem:[#allocation2 + $0x30] sm:$0xff] %v699
    %864 = vst [vmem:[#allocation2 + $0x38] sm:$0xff] %v704
    %865 = vst [vmem:[#allocation2 + $0x40] sm:$0xff] %v709
    %866 = vst [vmem:[#allocation2 + $0x48] sm:$0xff] %v714
    %867 = vst [vmem:[#allocation2 + $0x50] sm:$0xff] %v719
    %868 = vst [vmem:[#allocation2 + $0x58] sm:$0xff] %v724
    %869 = vst [vmem:[#allocation2 + $0x60] sm:$0xff] %v729
    %870 = vst [vmem:[#allocation2 + $0x68] sm:$0xff] %v734
    %871 = vst [vmem:[#allocation2 + $0x70] sm:$0xff] %v739
    %872 = vst [vmem:[#allocation2 + $0x78] sm:$0xff] %v744
    %873 = vst [vmem:[#allocation2 + $0x80] sm:$0xff] %v749
    %874 = vst [vmem:[#allocation2 + $0x88] sm:$0xff] %v754
    %875 = vst [vmem:[#allocation2 + $0x90] sm:$0xff] %v759
    %876 = vst [vmem:[#allocation2 + $0x98] sm:$0xff] %v764
    %877 = vst [vmem:[#allocation2 + $0xa0] sm:$0xff] %v769
    %878 = vst [vmem:[#allocation2 + $0xa8] sm:$0xff] %v774
    %879 = vst [vmem:[#allocation2 + $0xb0] sm:$0xff] %v779
    %880 = vst [vmem:[#allocation2 + $0xb8] sm:$0xff] %v784
    %881 = vst [vmem:[#allocation2 + $0xc0] sm:$0xff] %v789
    %882 = vst [vmem:[#allocation2 + $0xc8] sm:$0xff] %v794
    %883 = vst [vmem:[#allocation2 + $0xd0] sm:$0xff] %v799
    %884 = vst [vmem:[#allocation2 + $0xd8] sm:$0xff] %v804
    %885 = vst [vmem:[#allocation2 + $0xe0] sm:$0xff] %v809
    %886 = vst [vmem:[#allocation2 + $0xe8] sm:$0xff] %v814
    %887 = vst [vmem:[#allocation2 + $0xf0] sm:$0xff] %v819
    %888 = vst [vmem:[#allocation2 + $0xf8] sm:$0xff] %v824
    %889 = vst [vmem:[#allocation2 + $0x100] sm:$0xff] %v829
    %890 = vst [vmem:[#allocation2 + $0x108] sm:$0xff] %v834
    %891 = vst [vmem:[#allocation2 + $0x110] sm:$0xff] %v839
    %892 = vst [vmem:[#allocation2 + $0x118] sm:$0xff] %v844
    %893 = vst [vmem:[#allocation2 + $0x120] sm:$0xff] %v849
    %894 = vst [vmem:[#allocation2 + $0x128] sm:$0xff] %v854
    // Predicated region
    $region22: #{tpu_custom_call.1} parent=1 // pred_check
      _
    $region23: #{tpu_custom_call.1} parent=1 // pred_check_branch
      %896 = sbr.rel (0) target = $region25
    $region24: #{tpu_custom_call.1} parent=1 // pred_region
      %s898 = ssub.s32 4864, 4864
      %899 = vsyncadd [#allocation3], %s898
      %s900 = sshll.u32 [#allocation2], 4
      %s901 = int_to_ptr.vmem [resolvable:$true] %s900
      %906 = dma.vmem_to_hbm [thread:$0]  %s901, 4864, %s5, [#allocation3], 128, 128, 8
    $region25: #{tpu_custom_call.1} parent=1 // pred_fallthru
      _
    // Predicated region
    $region26: #{tpu_custom_call.1} parent=1 // pred_check
      _
    $region27: #{tpu_custom_call.1} parent=1 // pred_check_branch
      %908 = sbr.rel (0) target = $region29
    $region28: #{tpu_custom_call.1} parent=1 // pred_region
      %909 = dma.done [#allocation3], 4864
    $region29: #{tpu_custom_call.1} parent=1 // pred_fallthru
      _
    %910 = vsyncpa [#allocation3], 1

</llo_original>
